<compile_context>
chip_gen: v5e
topology: v5e:2x2
jax: 0.10.0
libtpu: 0.0.40
codegen_flags: <defaults>
</compile_context>

<pallas_src>
import functools

import jax
import jax.numpy as jnp
from jax import lax
from jax.experimental import pallas as pl
from jax.experimental.pallas import tpu as pltpu


_TILE_BUDGET_BYTES = 4 * 1024 * 1024      # per f32 tile (double-buffered in+out fits easily)
_VMEM_LIMIT_BYTES = 40 * 1024 * 1024      # > v5e/v6e scoped defaults, < v7x 64 MiB physical


# ---------------------------------------------------------------------------
# Path A: fused kernel, full-row blocks (one grid axis over the N*C rows).
# ---------------------------------------------------------------------------
def _fused_kernel(gamma_ref, beta_ref, x_ref, o_ref, *, hw, eps):
    inv_hw = jnp.float32(1.0 / hw)
    # Pass 1: mean.  (re-reads of x_ref below are VMEM-resident and effectively free)
    mean = jnp.sum(x_ref[...].astype(jnp.float32), axis=-1, keepdims=True) * inv_hw
    # Pass 2: two-pass (centered) variance for numerical stability.
    xc = x_ref[...].astype(jnp.float32) - mean
    var = jnp.sum(xc * xc, axis=-1, keepdims=True) * inv_hw
    inv = lax.rsqrt(var + jnp.float32(eps))
    scale = gamma_ref[...].astype(jnp.float32) * inv        # (Rblk, 1)
    shift = beta_ref[...].astype(jnp.float32) - mean * scale
    # Pass 3: apply (re-read x_ref instead of holding an extra f32 tile).
    o_ref[...] = (x_ref[...].astype(jnp.float32) * scale + shift).astype(o_ref.dtype)


# ---------------------------------------------------------------------------
# Path B (large H*W): column-tiled stats kernel + column-tiled apply kernel.
# ---------------------------------------------------------------------------
def _stats_kernel(x_ref, s1_ref, s2_ref, *, hw, cb):
    j = pl.program_id(1)

    @pl.when(j == 0)
    def _():
        s1_ref[...] = jnp.zeros_like(s1_ref)
        s2_ref[...] = jnp.zeros_like(s2_ref)

    x = x_ref[...].astype(jnp.float32)
    # Mask columns past the true H*W (ragged last column block): cheap VPU
    # compare+select instead of a zero-padded HBM copy.
    col = j * cb + lax.broadcasted_iota(jnp.int32, x.shape, 1)
    x = jnp.where(col < hw, x, 0.0)
    s1_ref[...] += jnp.sum(x, axis=-1, keepdims=True)
    s2_ref[...] += jnp.sum(x * x, axis=-1, keepdims=True)


def _apply_kernel(scale_ref, shift_ref, x_ref, o_ref):
    o_ref[...] = (x_ref[...].astype(jnp.float32) * scale_ref[...]
                  + shift_ref[...]).astype(o_ref.dtype)


# ---------------------------------------------------------------------------
# Tiling helpers.
# ---------------------------------------------------------------------------
def _round_down8(n):
    return (n // 8) * 8


def _choose_row_block(rows, row_width_elems):
    """Row block: multiple of 8, <=~4 MiB f32 tile, and >= ~4 grid steps."""
    if rows <= 8:
        return rows                      # block == full array dim (exempt from 8-rule)
    rb = _TILE_BUDGET_BYTES // (row_width_elems * 4)
    rb = max(8, min(1024, _round_down8(rb)))
    rows_p8 = ((rows + 7) // 8) * 8
    quarter = _round_down8(rows_p8 // 4)  # keep >=4 steps for pipelining / 2-TC split
    if quarter >= 8:
        rb = min(rb, quarter)
    return max(8, min(rb, rows_p8))


# ---------------------------------------------------------------------------
# Public wrapper.
# ---------------------------------------------------------------------------
def conditional_instance_norm2d(x, y, weight, bias, *, eps=1e-5,
                                _force_col_split=False, _col_block=None):
    """x: (N, C, H, W), y: (N, P), weight: (2C, P), bias: (2C,)."""
    N, C, H, W = x.shape
    HW = H * W
    rows = N * C

    # Hoisted conditioning affine: one small batched XLA matmul.
    aff = (y.astype(jnp.float32) @ weight.T.astype(jnp.float32)
           + bias.astype(jnp.float32))                    # (N, 2C)
    gamma = aff[:, :C].reshape(rows, 1)                   # (N*C, 1)
    beta = aff[:, C:].reshape(rows, 1)                    # (N*C, 1)

    x_flat = x.reshape(rows, HW)                          # free reshape, no HBM pass
    out_dtype = x.dtype

    use_col_split = _force_col_split or (8 * HW * 4 > _TILE_BUDGET_BYTES)
    if HW < 256:
        use_col_split = False

    if not use_col_split:
        # ---------------- Path A: single fused kernel -----------------------
        rb = _choose_row_block(rows, HW)
        out_flat = pl.pallas_call(
            functools.partial(_fused_kernel, hw=float(HW), eps=float(eps)),
            out_shape=jax.ShapeDtypeStruct((rows, HW), out_dtype),
            grid_spec=pltpu.PrefetchScalarGridSpec(
                num_scalar_prefetch=0,
                grid=(pl.cdiv(rows, rb),),
                in_specs=[
                    pl.BlockSpec((rb, 1), lambda i: (i, 0)),    # gamma (per row)
                    pl.BlockSpec((rb, 1), lambda i: (i, 0)),    # beta  (per row)
                    pl.BlockSpec((rb, HW), lambda i: (i, 0)),   # x rows (full width)
                ],
                out_specs=pl.BlockSpec((rb, HW), lambda i: (i, 0)),
            ),
            compiler_params=pltpu.CompilerParams(
                dimension_semantics=("parallel",),
                vmem_limit_bytes=_VMEM_LIMIT_BYTES,
            ),
        )(gamma, beta, x_flat)
        return out_flat.reshape(N, C, H, W)

    # ---------------- Path B: large H*W fallback ----------------------------
    cb = _col_block if _col_block is not None else max(128, min(32768, (HW // 128) * 128))
    rb = _choose_row_block(rows, cb)
    nR = pl.cdiv(rows, rb)
    nC = pl.cdiv(HW, cb)

    s1, s2 = pl.pallas_call(
        functools.partial(_stats_kernel, hw=HW, cb=cb),
        out_shape=(jax.ShapeDtypeStruct((rows, 1), jnp.float32),
                   jax.ShapeDtypeStruct((rows, 1), jnp.float32)),
        grid_spec=pltpu.PrefetchScalarGridSpec(
            num_scalar_prefetch=0,
            grid=(nR, nC),
            in_specs=[pl.BlockSpec((rb, cb), lambda i, j: (i, j))],
            out_specs=[pl.BlockSpec((rb, 1), lambda i, j: (i, 0)),   # resident across j
                       pl.BlockSpec((rb, 1), lambda i, j: (i, 0))],
        ),
        compiler_params=pltpu.CompilerParams(
            dimension_semantics=("parallel", "arbitrary"),
            vmem_limit_bytes=_VMEM_LIMIT_BYTES,
        ),
    )(x_flat)

    inv_hw = jnp.float32(1.0 / HW)
    mean = s1 * inv_hw
    var = jnp.maximum(s2 * inv_hw - mean * mean, 0.0)     # biased variance (InstanceNorm2d)
    inv = lax.rsqrt(var + jnp.float32(eps))
    scale = gamma * inv
    shift = beta - mean * scale

    out_flat = pl.pallas_call(
        _apply_kernel,
        out_shape=jax.ShapeDtypeStruct((rows, HW), out_dtype),
        grid_spec=pltpu.PrefetchScalarGridSpec(
            num_scalar_prefetch=0,
            grid=(nR, nC),
            in_specs=[
                pl.BlockSpec((rb, 1), lambda i, j: (i, 0)),     # scale
                pl.BlockSpec((rb, 1), lambda i, j: (i, 0)),     # shift
                pl.BlockSpec((rb, cb), lambda i, j: (i, j)),    # x
            ],
            out_specs=pl.BlockSpec((rb, cb), lambda i, j: (i, j)),
        ),
        compiler_params=pltpu.CompilerParams(
            dimension_semantics=("parallel", "parallel"),
            vmem_limit_bytes=_VMEM_LIMIT_BYTES,
        ),
    )(scale, shift, x_flat)
    return out_flat.reshape(N, C, H, W)


# ---------------------------------------------------------------------------
# Pure-JAX reference mirroring the PyTorch module semantics.
# ---------------------------------------------------------------------------
def _reference(x, y, weight, bias, eps=1e-5):
    N, C, H, W = x.shape
    mean = jnp.mean(x, axis=(2, 3), keepdims=True)
    var = jnp.mean(jnp.square(x - mean), axis=(2, 3), keepdims=True)
    out = (x - mean) / jnp.sqrt(var + eps)
    aff = y @ weight.T + bias                              # (N, 2C)
    gamma = aff[:, :C].reshape(N, C, 1, 1)
    beta = aff[:, C:].reshape(N, C, 1, 1)
    return gamma * out + beta


if __name__ == "__main__":
    # Small shapes consistent with the module: batch=2, channels=4, spatial=16,
    # conditioning params=8.
    N, C, H, W, P = 2, 4, 16, 16, 8

    key = jax.random.PRNGKey(0)
    kx, ky, kw, kb = jax.random.split(key, 4)

    x = jax.random.normal(kx, (N, C, H, W), dtype=jnp.float32)
    y = jax.random.normal(ky, (N, P), dtype=jnp.float32)

    # Parameter init mimicking the module's __init__:
    #   affine.weight: (2C, P); weight[:, :C] ~ N(1, 0.02), weight[:, C:] = 0
    #   affine.bias:   (2C,) default Linear init ~ U(-1/sqrt(P), 1/sqrt(P))
    weight = jnp.zeros((2 * C, P), dtype=jnp.float32)
    weight = weight.at[:, :C].set(
        1.0 + 0.02 * jax.random.normal(kw, (2 * C, C), dtype=jnp.float32)
    )
    bound = 1.0 / jnp.sqrt(jnp.float32(P))
    bias = jax.random.uniform(
        kb, (2 * C,), minval=-bound, maxval=bound, dtype=jnp.float32
    )

    ref = _reference(x, y, weight, bias)

    # Path A (fused, full-row blocks).
    out = conditional_instance_norm2d(x, y, weight, bias)
    out = jax.block_until_ready(out)
    assert out.shape == (N, C, H, W)
    assert jnp.allclose(out, ref, atol=1e-4, rtol=1e-4), "fused kernel != reference"

    # Path B (column-tiled large-H*W fallback), forced on the small input so
    # both code paths are compiled and verified.
    out2 = conditional_instance_norm2d(
        x, y, weight, bias, _force_col_split=True, _col_block=128
    )
    out2 = jax.block_until_ready(out2)
    assert jnp.allclose(out2, ref, atol=1e-4, rtol=1e-4), "col-tiled kernel != reference"

    print("KERNEL_OK")
</pallas_src>

<mosaic_0001>
module attributes {stable_mosaic.version = 11 : i64} {
  func.func @_fused_kernel(%arg0: i32, %arg1: memref<8x1xf32, #tpu.memory_space<vmem>>, %arg2: memref<8x1xf32, #tpu.memory_space<vmem>>, %arg3: memref<8x256xf32, #tpu.memory_space<vmem>>, %arg4: memref<8x256xf32, #tpu.memory_space<vmem>>) attributes {dimension_semantics = [#tpu.dimension_semantics<parallel>], iteration_bounds = array<i64: 1>, scalar_prefetch = 0 : i64, scratch_operands = 0 : i64, tpu.core_type = #tpu.core_type<tc>, window_params = [{transform_indices = @transform_0, window_bounds = array<i64: 8, 1>}, {transform_indices = @transform_1, window_bounds = array<i64: 8, 1>}, {transform_indices = @transform_2, window_bounds = array<i64: 8, 256>}, {transform_indices = @transform_3, window_bounds = array<i64: 8, 256>}]} {
    %c0 = arith.constant 0 : index
    %c0_0 = arith.constant 0 : index
    %0 = vector.load %arg3[%c0, %c0_0] : memref<8x256xf32, #tpu.memory_space<vmem>>, vector<8x256xf32>
    %cst = arith.constant dense<0.000000e+00> : vector<8xf32>
    %1 = vector.multi_reduction <add>, %0, %cst [1] : vector<8x256xf32> to vector<8xf32>
    %2 = vector.shape_cast %1 : vector<8xf32> to vector<8x1xf32>
    %cst_1 = arith.constant 3.906250e-03 : f32
    %3 = vector.broadcast %cst_1 : f32 to vector<8x1xf32>
    %4 = arith.mulf %2, %3 : vector<8x1xf32>
    %c0_2 = arith.constant 0 : index
    %c0_3 = arith.constant 0 : index
    %5 = vector.load %arg3[%c0_2, %c0_3] : memref<8x256xf32, #tpu.memory_space<vmem>>, vector<8x256xf32>
    %6 = vector.broadcast %4 : vector<8x1xf32> to vector<8x256xf32>
    %7 = arith.subf %5, %6 : vector<8x256xf32>
    %8 = arith.mulf %7, %7 : vector<8x256xf32>
    %cst_4 = arith.constant dense<0.000000e+00> : vector<8xf32>
    %9 = vector.multi_reduction <add>, %8, %cst_4 [1] : vector<8x256xf32> to vector<8xf32>
    %10 = vector.shape_cast %9 : vector<8xf32> to vector<8x1xf32>
    %cst_5 = arith.constant 3.906250e-03 : f32
    %11 = vector.broadcast %cst_5 : f32 to vector<8x1xf32>
    %12 = arith.mulf %10, %11 : vector<8x1xf32>
    %cst_6 = arith.constant 9.99999974E-6 : f32
    %13 = vector.broadcast %cst_6 : f32 to vector<8x1xf32>
    %14 = arith.addf %12, %13 : vector<8x1xf32>
    %15 = math.rsqrt %14 : vector<8x1xf32>
    %c0_7 = arith.constant 0 : index
    %c0_8 = arith.constant 0 : index
    %16 = vector.load %arg1[%c0_7, %c0_8] : memref<8x1xf32, #tpu.memory_space<vmem>>, vector<8x1xf32>
    %17 = arith.mulf %16, %15 : vector<8x1xf32>
    %c0_9 = arith.constant 0 : index
    %c0_10 = arith.constant 0 : index
    %18 = vector.load %arg2[%c0_9, %c0_10] : memref<8x1xf32, #tpu.memory_space<vmem>>, vector<8x1xf32>
    %19 = arith.mulf %4, %17 : vector<8x1xf32>
    %20 = arith.subf %18, %19 : vector<8x1xf32>
    %c0_11 = arith.constant 0 : index
    %c0_12 = arith.constant 0 : index
    %21 = vector.load %arg3[%c0_11, %c0_12] : memref<8x256xf32, #tpu.memory_space<vmem>>, vector<8x256xf32>
    %22 = vector.broadcast %17 : vector<8x1xf32> to vector<8x256xf32>
    %23 = arith.mulf %21, %22 : vector<8x256xf32>
    %24 = vector.broadcast %20 : vector<8x1xf32> to vector<8x256xf32>
    %25 = arith.addf %23, %24 : vector<8x256xf32>
    %c0_13 = arith.constant 0 : index
    %c0_14 = arith.constant 0 : index
    %26 = vector.load %arg4[%c0_13, %c0_14] : memref<8x256xf32, #tpu.memory_space<vmem>>, vector<8x256xf32>
    tpu.vector_store %arg4[%c0_13, %c0_14], %25 {strides = array<i32>} : memref<8x256xf32, #tpu.memory_space<vmem>>, vector<8x256xf32>,
    return
  }
  func.func @transform_0(%arg0: i32) -> (i32, i32) {
    %c0_i32 = arith.constant 0 : i32
    %c0_i32_0 = arith.constant 0 : i32
    return %arg0, %c0_i32 : i32, i32
  }
  func.func @transform_1(%arg0: i32) -> (i32, i32) {
    %c0_i32 = arith.constant 0 : i32
    %c0_i32_0 = arith.constant 0 : i32
    return %arg0, %c0_i32 : i32, i32
  }
  func.func @transform_2(%arg0: i32) -> (i32, i32) {
    %c0_i32 = arith.constant 0 : i32
    %c0_i32_0 = arith.constant 0 : i32
    return %arg0, %c0_i32 : i32, i32
  }
  func.func @transform_3(%arg0: i32) -> (i32, i32) {
    %c0_i32 = arith.constant 0 : i32
    %c0_i32_0 = arith.constant 0 : i32
    return %arg0, %c0_i32 : i32, i32
  }
}

</mosaic_0001>

<llo_original>
// kernel: tpu_custom_call.1
$region0: #{tpu_custom_call.1}
  #allocation0 [shape = 'u32[]', space=smem, size = 0x4, offset = 0x4, fixed_abs, tag = 'smem constant byte address 0x4 - core index']
  #allocation1 [shape = 'u32[72,128]{1,0:T(1,128)}', space=vmem, size = 0x9000, scoped, tag = 'internal scratch']
  %s0 = inlined_call_operand.vmem [shape: f32[8,1], index: 0, kind: input, shape index: {}]
  %s1 = inlined_call_operand.vmem [shape: f32[8,1], index: 1, kind: input, shape index: {}]
  %s2 = inlined_call_operand.vmem [shape: f32[8,256], index: 2, kind: input, shape index: {}]
  %s3 = inlined_call_operand.hbm [shape: f32[8,256], index: 3, kind: output, shape index: {}]
  %s4 = sld [smem:[#allocation0]]
  $region22: #{tpu_custom_call.1} parent=0
    _
  %s6 = ssub.s32 1, %s4
  %s7 = scalar_select 0, %s6, %s4
  $region1: #{tpu_custom_call.1} parent=0
    #allocation2 [shape = 'u8[8192]{0}', space=vmem, size = 0x2000, scoped, tag = 'output window, operand 0, single buffered']
    #allocation3 [shape = 's32[1]{0}', space=sflag, size = 0x4, scoped, tag = 'scoped memory for tpu_custom_call.1']
    %8 = vsyncpa [#allocation3], 0
    // Predicated region
    $region2: #{tpu_custom_call.1} parent=1 // pred_check
      _
    $region3: #{tpu_custom_call.1} parent=1 // pred_check_branch
      %10 = sbr.rel (0) target = $region5
    $region4: #{tpu_custom_call.1} parent=1 // pred_region
      _
    $region5: #{tpu_custom_call.1} parent=1 // pred_fallthru
      _
    // Predicated region
    $region6: #{tpu_custom_call.1} parent=1 // pred_check
      _
    $region7: #{tpu_custom_call.1} parent=1 // pred_check_branch
      %12 = sbr.rel (0) target = $region9
    $region8: #{tpu_custom_call.1} parent=1 // pred_region
      _
    $region9: #{tpu_custom_call.1} parent=1 // pred_fallthru
      _
    // Predicated region
    $region10: #{tpu_custom_call.1} parent=1 // pred_check
      _
    $region11: #{tpu_custom_call.1} parent=1 // pred_check_branch
      %14 = sbr.rel (0) target = $region13
    $region12: #{tpu_custom_call.1} parent=1 // pred_region
      _
    $region13: #{tpu_custom_call.1} parent=1 // pred_fallthru
      _
    %v15 = vld [vmem:[%s2] sm:$0xff]
    %v16 = vld [vmem:[%s2 + $0x8] sm:$0xff]
    %v17 = vadd.f32 %v15, %v16
    %18 = vadd.xlane.f32.xlu0 %v17
    %v19 = vpop.xlane.xlu0 %18
    %v20 = vmul.f32 %v19, 0.00390625
    %v21 = vsub.f32 %v15, %v20
    %v22 = vsub.f32 %v16, %v20
    %v23 = vmul.f32 %v21, %v21
    %v24 = vmul.f32 %v22, %v22
    %v25 = vadd.f32 %v23, %v24
    %26 = vadd.xlane.f32.xlu0 %v25
    %v27 = vpop.xlane.xlu0 %26
    %v28 = vmul.f32 %v27, 0.00390625
    %v29 = vadd.f32 %v28, 1e-05
    %v30 = vrsqrt.pop %v29
    %v31 = vmul.f32 %v30, %v29
    %v32 = vmul.f32 %v31, %v30
    %v33 = vmul.f32 0.5, %v32
    %v34 = vsub.f32 1.5, %v33
    %v35 = vmul.f32 %v30, %v34
    %vm36 = vweird.f32 %v29
    %vm37 = vweird.f32 %v30
    %vm38 = vmor %vm36, %vm37
    %v39 = vsel %vm38, %v30, %v35
    %v40 = vld [vmem:[%s0] sm:$0xff]
    %v41 = vmul.f32 %v40, %v39
    %v42 = vld [vmem:[%s1] sm:$0xff]
    %v43 = vmul.f32 %v20, %v41
    %v44 = vsub.f32 %v42, %v43
    %46 = vset.pattern.permute.xlu0 0
    %47 = vperm.xlu0 %46, %v41
    %v48 = vpop.permute.xlu0 %47
    %v50 = vmul.f32 %v15, %v48
    %v51 = vmul.f32 %v16, %v48
    %53 = vset.pattern.permute.xlu0 0
    %54 = vperm.xlu0 %53, %v44
    %v55 = vpop.permute.xlu0 %54
    %v57 = vadd.f32 %v50, %v55
    %v58 = vadd.f32 %v51, %v55
    %59 = vst [vmem:[#allocation2] sm:$0xff] %v57
    %60 = vst [vmem:[#allocation2 + $0x8] sm:$0xff] %v58
    // Predicated region
    $region14: #{tpu_custom_call.1} parent=1 // pred_check
      _
    $region15: #{tpu_custom_call.1} parent=1 // pred_check_branch
      %62 = sbr.rel (0) target = $region17
    $region16: #{tpu_custom_call.1} parent=1 // pred_region
      %64 = vsyncadd [#allocation3], 0
      %s66 = sshll.u32 [#allocation2], 4
      %s67 = int_to_ptr.vmem [resolvable:$true] %s66
      %s68 = sshll.u32 %s3, 4
      %s69 = int_to_ptr.hbm [resolvable:$true] %s68
      %71 = dma.vmem_to_hbm [thread:$0]  %s67, 256, %s69, [#allocation3]
    $region17: #{tpu_custom_call.1} parent=1 // pred_fallthru
      _
    // Predicated region
    $region18: #{tpu_custom_call.1} parent=1 // pred_check
      _
    $region19: #{tpu_custom_call.1} parent=1 // pred_check_branch
      %73 = sbr.rel (0) target = $region21
    $region20: #{tpu_custom_call.1} parent=1 // pred_region
      %75 = dma.done [#allocation3], 256
    $region21: #{tpu_custom_call.1} parent=1 // pred_fallthru
      _
    %76 = vsyncpa [#allocation3], 1

</llo_original>
